<compile_context>
chip_gen: v7x
topology: tpu7x:2x2x1
jax: 0.10.0
libtpu: 0.0.40
codegen_flags: <defaults>
</compile_context>

<pallas_src>
import functools

import jax
import jax.numpy as jnp
from jax.experimental import pallas as pl
from jax.experimental.pallas import tpu as pltpu


def _round_up(x, m):
    return (x + m - 1) // m * m


def _scale_linear_kernel(x_ref, w_ref, b_ref, t_ref, wh_ref, bh_ref, o_ref, acc_ref):
    k = pl.program_id(2)

    @pl.when(k == 0)
    def _():
        acc_ref[...] = jnp.zeros_like(acc_ref)

    # layer(x) partial product on the MXU, f32 accumulation (works for f32/bf16 inputs).
    acc_ref[...] += jnp.dot(x_ref[...], w_ref[...], preferred_element_type=jnp.float32)

    @pl.when(k == pl.num_programs(2) - 1)
    def _():
        y = acc_ref[...] + b_ref[...].astype(jnp.float32)            # (tm, tn) + (1, tn)
        # hyper(t): rank-1 outer product + bias, computed in f32 (NO sigmoid).
        gate = (t_ref[...].astype(jnp.float32) * wh_ref[...].astype(jnp.float32)
                + bh_ref[...].astype(jnp.float32))                    # (tm,1)*(1,tn)+(1,tn)
        o_ref[...] = (y * gate).astype(o_ref.dtype)


@functools.partial(jax.jit, static_argnames=("tm", "tn", "tk"))
def _scale_linear_2d(x, t, w_layer, b_layer, w_hyper, b_hyper, *, tm, tn, tk):
    M, K = x.shape
    N = w_layer.shape[1]

    Mp, Kp, Np = _round_up(M, tm), _round_up(K, tk), _round_up(N, tn)

    # Zero-pad to tile-aligned shapes (padding contributes nothing; sliced off below).
    if (Mp, Kp) != (M, K):
        x = jnp.pad(x, ((0, Mp - M), (0, Kp - K)))
    if Mp != M:
        t = jnp.pad(t, ((0, Mp - M), (0, 0)))
    if (Kp, Np) != (K, N):
        w_layer = jnp.pad(w_layer, ((0, Kp - K), (0, Np - N)))
    if Np != N:
        b_layer = jnp.pad(b_layer, ((0, 0), (0, Np - N)))
        w_hyper = jnp.pad(w_hyper, ((0, 0), (0, Np - N)))
        b_hyper = jnp.pad(b_hyper, ((0, 0), (0, Np - N)))

    grid = (Mp // tm, Np // tn, Kp // tk)

    itemsize = jnp.dtype(x.dtype).itemsize
    vmem_bytes = (2 * (tm * tk + tk * tn + tm * tn) * itemsize   # x, w, out (double-buffered)
                  + tm * tn * 4                                  # f32 accumulator scratch
                  + 4 * (tm + 3 * tn) * itemsize)                # t, biases, hyper weight blocks
    vmem_limit = int(max(vmem_bytes + (8 << 20), 32 << 20))

    cost = pl.CostEstimate(
        flops=2 * Mp * Kp * Np,
        transcendentals=0,
        bytes_accessed=itemsize * (Mp * Kp + Kp * Np + Mp * Np))

    out = pl.pallas_call(
        _scale_linear_kernel,
        out_shape=jax.ShapeDtypeStruct((Mp, Np), x.dtype),
        grid_spec=pltpu.PrefetchScalarGridSpec(
            num_scalar_prefetch=0,
            grid=grid,
            in_specs=[
                pl.BlockSpec((tm, tk), lambda i, j, k: (i, k)),   # x row/col tile
                pl.BlockSpec((tk, tn), lambda i, j, k: (k, j)),   # layer weight tile
                pl.BlockSpec((1, tn), lambda i, j, k: (0, j)),    # layer bias
                pl.BlockSpec((tm, 1), lambda i, j, k: (i, 0)),    # t rows
                pl.BlockSpec((1, tn), lambda i, j, k: (0, j)),    # hyper weight
                pl.BlockSpec((1, tn), lambda i, j, k: (0, j)),    # hyper bias
            ],
            out_specs=pl.BlockSpec((tm, tn), lambda i, j, k: (i, j)),
            scratch_shapes=[pltpu.VMEM((tm, tn), jnp.float32)],
        ),
        compiler_params=pltpu.CompilerParams(
            dimension_semantics=("parallel", "parallel", "arbitrary"),
            vmem_limit_bytes=vmem_limit),
        cost_estimate=cost,
    )(x, w_layer, b_layer, t, w_hyper, b_hyper)

    if (Mp, Np) != (M, N):
        out = out[:M, :N]
    return out


def _pick_tiles(M, K, N):
    # Largest tiles that comfortably fit VMEM on every generation; 512 is a
    # multiple of both 128 (v5e MXU) and 256 (v6e/v7x MXU).  Small dims shrink
    # to one (8,128)-aligned tile so toy shapes don't over-pad.
    tm = min(512, _round_up(M, 8))
    tn = min(512, _round_up(N, 128))
    tk = min(512, _round_up(K, 128))
    return tm, tn, tk


def scale_linear(t, x, params, *, tm=None, tn=None, tk=None):
    """Mirrors ScaleLinear.forward(t, x).

    t: (B, 1);  x: (B, dim_in) or (B, S, dim_in).
    """
    w_layer, b_layer, w_hyper, b_hyper = params
    N = w_layer.shape[1]
    if x.ndim == 3:
        B, S, K = x.shape
        M = B * S
        x2 = x.reshape(M, K)
        # gate.unsqueeze(1): every one of the S rows of batch b sees t[b].
        # (cheap broadcast; avoids jnp.repeat's gather)
        t2 = jnp.broadcast_to(t[:, None, :], (B, S, 1)).reshape(M, 1)
    else:
        M, K = x.shape
        x2, t2 = x, t

    dm, dn, dk = _pick_tiles(M, K, N)
    tm, tn, tk = tm or dm, tn or dn, tk or dk

    out = _scale_linear_2d(x2, t2, w_layer, b_layer, w_hyper, b_hyper,
                           tm=tm, tn=tn, tk=tk)
    return out.reshape(B, S, N) if x.ndim == 3 else out


def init_params(key, dim_in, dim_out, dtype=jnp.float32):
    """Deterministic init matching nn.Linear's shapes (uniform +-1/sqrt(fan_in))."""
    k1, k2, k3, k4 = jax.random.split(key, 4)
    lim_l = 1.0 / jnp.sqrt(dim_in)
    lim_h = 1.0  # hyper has fan_in = 1
    w_layer = jax.random.uniform(k1, (dim_in, dim_out), dtype, -lim_l, lim_l)
    b_layer = jax.random.uniform(k2, (1, dim_out), dtype, -lim_l, lim_l)
    w_hyper = jax.random.uniform(k3, (1, dim_out), dtype, -lim_h, lim_h)
    b_hyper = jax.random.uniform(k4, (1, dim_out), dtype, -lim_h, lim_h)
    return w_layer, b_layer, w_hyper, b_hyper


def _reference(t, x, params):
    w_layer, b_layer, w_hyper, b_hyper = params
    gate = t @ w_hyper + b_hyper                    # (B, dim_out)  -- no sigmoid
    if x.ndim == 3:
        gate = gate[:, None, :]
    return (x @ w_layer + b_layer) * gate


if __name__ == "__main__":
    key = jax.random.PRNGKey(0)
    dim_in, dim_out = 32, 128
    params = init_params(key, dim_in, dim_out)

    kx, kt, kx3, kt3 = jax.random.split(jax.random.PRNGKey(1), 4)

    # 2-D case: x (B, dim_in), t (B, 1)
    B = 8
    x2d = jax.random.normal(kx, (B, dim_in), jnp.float32)
    t2d = jax.random.uniform(kt, (B, 1), jnp.float32)
    out2d = jax.block_until_ready(scale_linear(t2d, x2d, params))
    ref2d = _reference(t2d, x2d, params)
    assert out2d.shape == (B, dim_out)
    assert jnp.allclose(out2d, ref2d, atol=1e-5, rtol=1e-5)

    # 3-D case: x (B, S, dim_in), t (B, 1)  -> gate.unsqueeze(1) broadcast
    B3, S = 2, 8
    x3d = jax.random.normal(kx3, (B3, S, dim_in), jnp.float32)
    t3d = jax.random.uniform(kt3, (B3, 1), jnp.float32)
    out3d = jax.block_until_ready(scale_linear(t3d, x3d, params))
    ref3d = _reference(t3d, x3d, params)
    assert out3d.shape == (B3, S, dim_out)
    assert jnp.allclose(out3d, ref3d, atol=1e-5, rtol=1e-5)

    # Ragged / non-128-aligned dims exercise the padding path.
    params_r = init_params(jax.random.PRNGKey(2), 20, 48)
    xr = jax.random.normal(jax.random.PRNGKey(3), (5, 20), jnp.float32)
    tr = jax.random.uniform(jax.random.PRNGKey(4), (5, 1), jnp.float32)
    out_r = jax.block_until_ready(scale_linear(tr, xr, params_r))
    ref_r = _reference(tr, xr, params_r)
    assert out_r.shape == (5, 48)
    assert jnp.allclose(out_r, ref_r, atol=1e-5, rtol=1e-5)

    # bf16 inputs: MXU runs at full bf16 rate, accumulation + gate stay in f32.
    params_bf = tuple(p.astype(jnp.bfloat16) for p in params)
    out_bf = jax.block_until_ready(
        scale_linear(t2d.astype(jnp.bfloat16), x2d.astype(jnp.bfloat16), params_bf))
    assert out_bf.shape == (B, dim_out)
    assert jnp.allclose(out_bf.astype(jnp.float32), ref2d, atol=1e-1, rtol=1e-1)

    print("KERNEL_OK")
</pallas_src>

<mosaic_0001>
module attributes {stable_mosaic.version = 11 : i64} {
  func.func @_scale_linear_kernel(%arg0: i32, %arg1: i32, %arg2: i32, %arg3: memref<8x128xf32, #tpu.memory_space<vmem>>, %arg4: memref<128x128xf32, #tpu.memory_space<vmem>>, %arg5: memref<1x128xf32, #tpu.memory_space<vmem>>, %arg6: memref<8x1xf32, #tpu.memory_space<vmem>>, %arg7: memref<1x128xf32, #tpu.memory_space<vmem>>, %arg8: memref<1x128xf32, #tpu.memory_space<vmem>>, %arg9: memref<8x128xf32, #tpu.memory_space<vmem>>, %arg10: memref<8x128xf32, #tpu.memory_space<vmem>>) attributes {dimension_semantics = [#tpu.dimension_semantics<parallel>, #tpu.dimension_semantics<parallel>, #tpu.dimension_semantics<arbitrary>], iteration_bounds = array<i64: 1, 1, 1>, scalar_prefetch = 0 : i64, scratch_operands = 1 : i64, tpu.core_type = #tpu.core_type<tc>, window_params = [{transform_indices = @transform_0, window_bounds = array<i64: 8, 128>}, {transform_indices = @transform_1, window_bounds = array<i64: 128, 128>}, {transform_indices = @transform_2, window_bounds = array<i64: 1, 128>}, {transform_indices = @transform_3, window_bounds = array<i64: 8, 1>}, {transform_indices = @transform_4, window_bounds = array<i64: 1, 128>}, {transform_indices = @transform_5, window_bounds = array<i64: 1, 128>}, {transform_indices = @transform_6, window_bounds = array<i64: 8, 128>}]} {
    %c0_i32 = arith.constant 0 : i32
    %0 = arith.cmpi eq, %arg2, %c0_i32 : i32
    %1 = arith.extui %0 : i1 to i32
    %c0_i32_0 = arith.constant 0 : i32
    %2 = arith.cmpi ne, %1, %c0_i32_0 : i32
    scf.if %2 {
      %cst_10 = arith.constant 0.000000e+00 : f32
      %12 = vector.broadcast %cst_10 : f32 to vector<8x128xf32>
      %c0_11 = arith.constant 0 : index
      %c0_12 = arith.constant 0 : index
      %13 = vector.load %arg10[%c0_11, %c0_12] : memref<8x128xf32, #tpu.memory_space<vmem>>, vector<8x128xf32>
      tpu.vector_store %arg10[%c0_11, %c0_12], %12 {strides = array<i32>} : memref<8x128xf32, #tpu.memory_space<vmem>>, vector<8x128xf32>,
    } else {
    }
    %c0 = arith.constant 0 : index
    %c0_1 = arith.constant 0 : index
    %3 = vector.load %arg10[%c0, %c0_1] : memref<8x128xf32, #tpu.memory_space<vmem>>, vector<8x128xf32>
    %c0_2 = arith.constant 0 : index
    %c0_3 = arith.constant 0 : index
    %4 = vector.load %arg3[%c0_2, %c0_3] : memref<8x128xf32, #tpu.memory_space<vmem>>, vector<8x128xf32>
    %c0_4 = arith.constant 0 : index
    %c0_5 = arith.constant 0 : index
    %5 = vector.load %arg4[%c0_4, %c0_5] : memref<128x128xf32, #tpu.memory_space<vmem>>, vector<128x128xf32>
    %cst = arith.constant dense<0.000000e+00> : vector<8x128xf32>
    %6 = tpu.matmul %4, %5, %cst {dimension_numbers = #tpu.dot_dimension_numbers<[1], [0], [0], [1], [0, 0, 1, 1], [], []>} : vector<8x128xf32>, vector<128x128xf32>, vector<8x128xf32> -> vector<8x128xf32>
    %7 = arith.addf %3, %6 : vector<8x128xf32>
    %c0_6 = arith.constant 0 : index
    %c0_7 = arith.constant 0 : index
    %8 = vector.load %arg10[%c0_6, %c0_7] : memref<8x128xf32, #tpu.memory_space<vmem>>, vector<8x128xf32>
    tpu.vector_store %arg10[%c0_6, %c0_7], %7 {strides = array<i32>} : memref<8x128xf32, #tpu.memory_space<vmem>>, vector<8x128xf32>,
    %c0_i32_8 = arith.constant 0 : i32
    %9 = arith.cmpi eq, %arg2, %c0_i32_8 : i32
    %10 = arith.extui %9 : i1 to i32
    %c0_i32_9 = arith.constant 0 : i32
    %11 = arith.cmpi ne, %10, %c0_i32_9 : i32
    scf.if %11 {
      %c0_10 = arith.constant 0 : index
      %c0_11 = arith.constant 0 : index
      %12 = vector.load %arg10[%c0_10, %c0_11] : memref<8x128xf32, #tpu.memory_space<vmem>>, vector<8x128xf32>
      %c0_12 = arith.constant 0 : index
      %c0_13 = arith.constant 0 : index
      %13 = vector.load %arg5[%c0_12, %c0_13] : memref<1x128xf32, #tpu.memory_space<vmem>>, vector<1x128xf32>
      %14 = vector.broadcast %13 : vector<1x128xf32> to vector<8x128xf32>
      %15 = arith.addf %12, %14 : vector<8x128xf32>
      %c0_14 = arith.constant 0 : index
      %c0_15 = arith.constant 0 : index
      %16 = vector.load %arg6[%c0_14, %c0_15] : memref<8x1xf32, #tpu.memory_space<vmem>>, vector<8x1xf32>
      %c0_16 = arith.constant 0 : index
      %c0_17 = arith.constant 0 : index
      %17 = vector.load %arg7[%c0_16, %c0_17] : memref<1x128xf32, #tpu.memory_space<vmem>>, vector<1x128xf32>
      %18 = vector.broadcast %16 : vector<8x1xf32> to vector<8x128xf32>
      %19 = vector.broadcast %17 : vector<1x128xf32> to vector<8x128xf32>
      %20 = arith.mulf %18, %19 : vector<8x128xf32>
      %c0_18 = arith.constant 0 : index
      %c0_19 = arith.constant 0 : index
      %21 = vector.load %arg8[%c0_18, %c0_19] : memref<1x128xf32, #tpu.memory_space<vmem>>, vector<1x128xf32>
      %22 = vector.broadcast %21 : vector<1x128xf32> to vector<8x128xf32>
      %23 = arith.addf %20, %22 : vector<8x128xf32>
      %24 = arith.mulf %15, %23 : vector<8x128xf32>
      %c0_20 = arith.constant 0 : index
      %c0_21 = arith.constant 0 : index
      %25 = vector.load %arg9[%c0_20, %c0_21] : memref<8x128xf32, #tpu.memory_space<vmem>>, vector<8x128xf32>
      tpu.vector_store %arg9[%c0_20, %c0_21], %24 {strides = array<i32>} : memref<8x128xf32, #tpu.memory_space<vmem>>, vector<8x128xf32>,
    } else {
    }
    return
  }
  func.func @transform_0(%arg0: i32, %arg1: i32, %arg2: i32) -> (i32, i32) {
    %c0_i32 = arith.constant 0 : i32
    return %arg0, %arg2 : i32, i32
  }
  func.func @transform_1(%arg0: i32, %arg1: i32, %arg2: i32) -> (i32, i32) {
    %c0_i32 = arith.constant 0 : i32
    return %arg2, %arg1 : i32, i32
  }
  func.func @transform_2(%arg0: i32, %arg1: i32, %arg2: i32) -> (i32, i32) {
    %c0_i32 = arith.constant 0 : i32
    %c0_i32_0 = arith.constant 0 : i32
    return %c0_i32, %arg1 : i32, i32
  }
  func.func @transform_3(%arg0: i32, %arg1: i32, %arg2: i32) -> (i32, i32) {
    %c0_i32 = arith.constant 0 : i32
    %c0_i32_0 = arith.constant 0 : i32
    return %arg0, %c0_i32 : i32, i32
  }
  func.func @transform_4(%arg0: i32, %arg1: i32, %arg2: i32) -> (i32, i32) {
    %c0_i32 = arith.constant 0 : i32
    %c0_i32_0 = arith.constant 0 : i32
    return %c0_i32, %arg1 : i32, i32
  }
  func.func @transform_5(%arg0: i32, %arg1: i32, %arg2: i32) -> (i32, i32) {
    %c0_i32 = arith.constant 0 : i32
    %c0_i32_0 = arith.constant 0 : i32
    return %c0_i32, %arg1 : i32, i32
  }
  func.func @transform_6(%arg0: i32, %arg1: i32, %arg2: i32) -> (i32, i32) {
    %c0_i32 = arith.constant 0 : i32
    return %arg0, %arg1 : i32, i32
  }
}

</mosaic_0001>

<llo_original>
// kernel: _scale_linear_2d.1
$region0: #{_scale_linear_2d.1}
  #allocation0 [shape = 'u32[]', space=smem, size = 0x4, offset = 0x4, fixed_abs, tag = 'smem constant byte address 0x4 - core index']
  #allocation1 [shape = 'u32[144,128]{1,0:T(1,128)}', space=vmem, size = 0x12000, scoped, tag = 'internal scratch']
  #allocation2 [shape = 'f32[8,128]{1,0:T(8,128)}', space=vmem, size = 0x1000, scoped, tag = 'scratch operand']
  %s0 = inlined_call_operand.vmem [shape: f32[8,128], index: 0, kind: input, shape index: {}]
  %s1 = inlined_call_operand.vmem [shape: f32[128,128], index: 1, kind: input, shape index: {}]
  %s2 = inlined_call_operand.vmem [shape: f32[1,128], index: 2, kind: input, shape index: {}]
  %s3 = inlined_call_operand.vmem [shape: f32[8,1], index: 3, kind: input, shape index: {}]
  %s4 = inlined_call_operand.vmem [shape: f32[1,128], index: 4, kind: input, shape index: {}]
  %s5 = inlined_call_operand.vmem [shape: f32[1,128], index: 5, kind: input, shape index: {}]
  %s6 = inlined_call_operand.hbm [shape: f32[8,128], index: 6, kind: output, shape index: {}]
  %s7 = sld [smem:[#allocation0]]
  $region42: #{_scale_linear_2d.1} parent=0
    _
  %s9 = ssub.s32 1, %s7
  %s10 = scalar_select 0, %s9, %s7
  $region1: #{_scale_linear_2d.1} parent=0
    #allocation3 [shape = 'u8[4096]{0}', space=vmem, size = 0x1000, scoped, tag = 'output window, operand 0, single buffered']
    #allocation4 [shape = 's32[1]{0}', space=sflag, size = 0x4, scoped, tag = 'scoped memory for _scale_linear_2d.1']
    %11 = vsyncpa [#allocation4], 0
    // Predicated region
    $region2: #{_scale_linear_2d.1} parent=1 // pred_check
      _
    $region3: #{_scale_linear_2d.1} parent=1 // pred_check_branch
      %13 = sbr.rel (0) target = $region5
    $region4: #{_scale_linear_2d.1} parent=1 // pred_region
      _
    $region5: #{_scale_linear_2d.1} parent=1 // pred_fallthru
      _
    // Predicated region
    $region6: #{_scale_linear_2d.1} parent=1 // pred_check
      _
    $region7: #{_scale_linear_2d.1} parent=1 // pred_check_branch
      %15 = sbr.rel (0) target = $region9
    $region8: #{_scale_linear_2d.1} parent=1 // pred_region
      _
    $region9: #{_scale_linear_2d.1} parent=1 // pred_fallthru
      _
    // Predicated region
    $region10: #{_scale_linear_2d.1} parent=1 // pred_check
      _
    $region11: #{_scale_linear_2d.1} parent=1 // pred_check_branch
      %17 = sbr.rel (0) target = $region13
    $region12: #{_scale_linear_2d.1} parent=1 // pred_region
      _
    $region13: #{_scale_linear_2d.1} parent=1 // pred_fallthru
      _
    // Predicated region
    $region14: #{_scale_linear_2d.1} parent=1 // pred_check
      _
    $region15: #{_scale_linear_2d.1} parent=1 // pred_check_branch
      %19 = sbr.rel (0) target = $region17
    $region16: #{_scale_linear_2d.1} parent=1 // pred_region
      _
    $region17: #{_scale_linear_2d.1} parent=1 // pred_fallthru
      _
    // Predicated region
    $region18: #{_scale_linear_2d.1} parent=1 // pred_check
      _
    $region19: #{_scale_linear_2d.1} parent=1 // pred_check_branch
      %21 = sbr.rel (0) target = $region21
    $region20: #{_scale_linear_2d.1} parent=1 // pred_region
      _
    $region21: #{_scale_linear_2d.1} parent=1 // pred_fallthru
      _
    // Predicated region
    $region22: #{_scale_linear_2d.1} parent=1 // pred_check
      _
    $region23: #{_scale_linear_2d.1} parent=1 // pred_check_branch
      %23 = sbr.rel (0) target = $region25
    $region24: #{_scale_linear_2d.1} parent=1 // pred_region
      _
    $region25: #{_scale_linear_2d.1} parent=1 // pred_fallthru
      _
    %p24 = scmp.eq.s32.totalorder 0, 0
    // Predicated region
    $region26: #{_scale_linear_2d.1} parent=1 // pred_check
      %p25 = pneg %p24
    $region27: #{_scale_linear_2d.1} parent=1 // pred_check_branch
      %27 = sbr.rel (%p25) target = $region29
    $region28: #{_scale_linear_2d.1} parent=1 // pred_region
      %28 = vst [vmem:[#allocation2] sm:$0xff] 0.0
    $region29: #{_scale_linear_2d.1} parent=1 // pred_fallthru
      _
    %v29 = vld [vmem:[#allocation2] sm:$0xff]
    %v30 = vld [vmem:[%s0] sm:$0xff]
    %v31 = vld [vmem:[%s1] sm:$0xff]
    %v32 = vld [vmem:[%s1 + $0x8] sm:$0xff]
    %v33 = vld [vmem:[%s1 + $0x10] sm:$0xff]
    %v34 = vld [vmem:[%s1 + $0x18] sm:$0xff]
    %v35 = vld [vmem:[%s1 + $0x20] sm:$0xff]
    %v36 = vld [vmem:[%s1 + $0x28] sm:$0xff]
    %v37 = vld [vmem:[%s1 + $0x30] sm:$0xff]
    %v38 = vld [vmem:[%s1 + $0x38] sm:$0xff]
    %v39 = vld [vmem:[%s1 + $0x40] sm:$0xff]
    %v40 = vld [vmem:[%s1 + $0x48] sm:$0xff]
    %v41 = vld [vmem:[%s1 + $0x50] sm:$0xff]
    %v42 = vld [vmem:[%s1 + $0x58] sm:$0xff]
    %v43 = vld [vmem:[%s1 + $0x60] sm:$0xff]
    %v44 = vld [vmem:[%s1 + $0x68] sm:$0xff]
    %v45 = vld [vmem:[%s1 + $0x70] sm:$0xff]
    %v46 = vld [vmem:[%s1 + $0x78] sm:$0xff]
    %47 = vmatprep.subr.mxu0 0.0
    %48 = vmatpush1.msra.mxu0 %v31
    %49 = vmatprep.subr.mxu0 0.0
    %50 = vmatpush1.msra.mxu0 %v32
    %51 = vmatprep.subr.mxu0 0.0
    %52 = vmatpush1.msra.mxu0 %v33
    %53 = vmatprep.subr.mxu0 0.0
    %54 = vmatpush1.msra.mxu0 %v34
    %55 = vmatprep.subr.mxu0 0.0
    %56 = vmatpush1.msra.mxu0 %v35
    %57 = vmatprep.subr.mxu0 0.0
    %58 = vmatpush1.msra.mxu0 %v36
    %59 = vmatprep.subr.mxu0 0.0
    %60 = vmatpush1.msra.mxu0 %v37
    %61 = vmatprep.subr.mxu0 0.0
    %62 = vmatpush1.msra.mxu0 %v38
    %63 = vmatprep.subr.mxu0 0.0
    %64 = vmatpush1.msra.mxu0 %v39
    %65 = vmatprep.subr.mxu0 0.0
    %66 = vmatpush1.msra.mxu0 %v40
    %67 = vmatprep.subr.mxu0 0.0
    %68 = vmatpush1.msra.mxu0 %v41
    %69 = vmatprep.subr.mxu0 0.0
    %70 = vmatpush1.msra.mxu0 %v42
    %71 = vmatprep.subr.mxu0 0.0
    %72 = vmatpush1.msra.mxu0 %v43
    %73 = vmatprep.subr.mxu0 0.0
    %74 = vmatpush1.msra.mxu0 %v44
    %75 = vmatprep.subr.mxu0 0.0
    %76 = vmatpush1.msra.mxu0 %v45
    %77 = vmatprep.subr.mxu0 0.0
    %78 = vmatpush1.msra.mxu0 %v46
    %79 = vmatprep.subr.mxu0 0.0
    %80 = vmatpush1.msra.mxu0 0.0
    %81 = vmatprep.subr.mxu0 0.0
    %82 = vmatpush1.msra.mxu0 0.0
    %83 = vmatprep.subr.mxu0 0.0
    %84 = vmatpush1.msra.mxu0 0.0
    %85 = vmatprep.subr.mxu0 0.0
    %86 = vmatpush1.msra.mxu0 0.0
    %87 = vmatprep.subr.mxu0 0.0
    %88 = vmatpush1.msra.mxu0 0.0
    %89 = vmatprep.subr.mxu0 0.0
    %90 = vmatpush1.msra.mxu0 0.0
    %91 = vmatprep.subr.mxu0 0.0
    %92 = vmatpush1.msra.mxu0 0.0
    %93 = vmatprep.subr.mxu0 0.0
    %94 = vmatpush1.msra.mxu0 0.0
    %95 = vmatprep.subr.mxu0 0.0
    %96 = vmatpush1.msra.mxu0 0.0
    %97 = vmatprep.subr.mxu0 0.0
    %98 = vmatpush1.msra.mxu0 0.0
    %99 = vmatprep.subr.mxu0 0.0
    %100 = vmatpush1.msra.mxu0 0.0
    %101 = vmatprep.subr.mxu0 0.0
    %102 = vmatpush1.msra.mxu0 0.0
    %103 = vmatprep.subr.mxu0 0.0
    %104 = vmatpush1.msra.mxu0 0.0
    %105 = vmatprep.subr.mxu0 0.0
    %106 = vmatpush1.msra.mxu0 0.0
    %107 = vmatprep.subr.mxu0 0.0
    %108 = vmatpush1.msra.mxu0 0.0
    %109 = vmatprep.subr.mxu0 0.0
    %110 = vmatpush1.msra.mxu0 0.0
    %111 = vmatprep.mubr.f32.mxu0 0.0
    %112 = vmatmul.mubr.f32.gmra.mrb[0].mxu0 %v30
    %v113 = vpop.f32.mrb[0].mxu0
    %v114 = vadd.f32 0.0, %v113
    %v115 = vpop.f32.mrb[0].mxu0
    %116 = vdwg.mxu0
    %v117 = vadd.f32 %v29, %v114
    %118 = vst [vmem:[#allocation2] sm:$0xff] %v117
    // Predicated region
    $region30: #{_scale_linear_2d.1} parent=1 // pred_check
      %p119 = pneg %p24
    $region31: #{_scale_linear_2d.1} parent=1 // pred_check_branch
      %121 = sbr.rel (%p119) target = $region33
    $region32: #{_scale_linear_2d.1} parent=1 // pred_region
      %v122 = vld [vmem:[#allocation2] sm:$0xff]
      %v123 = vld [vmem:[%s2] sm:$0x1]
      %v125 = vlaneseq
      %v126 = vshrl.u32 %v125, 7
      %v127 = vsub.s32 0, %v126
      %v128 = vrot.slane %v123, %v127
      %v130 = vadd.f32 %v122, %v128
      %v131 = vld [vmem:[%s3] sm:$0xff]
      %v132 = vld [vmem:[%s4] sm:$0x1]
      %134 = vset.pattern.permute.xlu0 0
      %135 = vperm.xlu0 %134, %v131
      %v136 = vpop.permute.xlu0 %135
      %v139 = vlaneseq
      %v140 = vshrl.u32 %v139, 7
      %v141 = vsub.s32 0, %v140
      %v142 = vrot.slane %v132, %v141
      %v144 = vmul.f32 %v136, %v142
      %v145 = vld [vmem:[%s5] sm:$0x1]
      %v147 = vlaneseq
      %v148 = vshrl.u32 %v147, 7
      %v149 = vsub.s32 0, %v148
      %v150 = vrot.slane %v145, %v149
      %v152 = vadd.f32 %v144, %v150
      %v153 = vmul.f32 %v130, %v152
      %154 = vst [vmem:[#allocation3] sm:$0xff] %v153
    $region33: #{_scale_linear_2d.1} parent=1 // pred_fallthru
      _
    // Predicated region
    $region34: #{_scale_linear_2d.1} parent=1 // pred_check
      _
    $region35: #{_scale_linear_2d.1} parent=1 // pred_check_branch
      %156 = sbr.rel (0) target = $region37
    $region36: #{_scale_linear_2d.1} parent=1 // pred_region
      %s158 = ssub.s32 128, 128
      %159 = vsyncadd [#allocation4], %s158
      %s161 = sshll.u32 [#allocation3], 4
      %s162 = int_to_ptr.vmem [resolvable:$true] %s161
      %164 = dma.vmem_to_hbm [thread:$0]  %s162, 128, %s6, [#allocation4]
    $region37: #{_scale_linear_2d.1} parent=1 // pred_fallthru
      _
    // Predicated region
    $region38: #{_scale_linear_2d.1} parent=1 // pred_check
      _
    $region39: #{_scale_linear_2d.1} parent=1 // pred_check_branch
      %166 = sbr.rel (0) target = $region41
    $region40: #{_scale_linear_2d.1} parent=1 // pred_region
      %167 = dma.done [#allocation4], 128
    $region41: #{_scale_linear_2d.1} parent=1 // pred_fallthru
      _
    %168 = vsyncpa [#allocation4], 1

</llo_original>
